<compile_context>
chip_gen: v7x
topology: tpu7x:2x2x1
jax: 0.10.0
libtpu: 0.0.40
codegen_flags: <defaults>
</compile_context>

<pallas_src>
import jax
import jax.numpy as jnp
from jax.experimental import pallas as pl
from jax.experimental.pallas import tpu as pltpu


# ---------------------------------------------------------------------------
# Kernel
# ---------------------------------------------------------------------------
def _conv3x3_banded(act_f32, wb_ref, pad_ref):
    """3x3 'same' conv (stride=1, pad=1, no bias) via 3 row-band matmuls.

    act_f32: (bt, H, W*Ci) f32 activations (W and C interleaved on lanes).
    wb_ref:  (3, W*Ci, W*Co) banded weights; kx taps + W zero-padding folded in.
    pad_ref: (bt, H+2, W*Ci) VMEM scratch; rows 0 and H+1 must already be zero.
    Returns (bt, H, W*Co) float32.
    """
    bt, H, WCi = act_f32.shape
    WCo = wb_ref.shape[-1]
    # Only interior rows are written; the zero border rows are preserved.
    pad_ref[:, 1:H + 1, :] = act_f32.astype(pad_ref.dtype)
    acc = None
    for ky in range(3):
        lhs = pad_ref[:, ky:ky + H, :].reshape(bt * H, WCi)
        part = jnp.dot(lhs, wb_ref[ky], preferred_element_type=jnp.float32)
        acc = part if acc is None else acc + part
    return acc.reshape(bt, H, WCo)


def transpose_preact_block_kernel(x_ref, s1_ref, b1_ref, wb1_ref,
                                  s2_ref, b2_ref, wb2_ref,
                                  o_ref, pad_ref):
    bt, H, WC = x_ref.shape

    # Zero ONLY the two H-border rows of the padded scratch (the interior is
    # fully overwritten before each conv).  Done every grid step so it stays
    # correct under core-parallel grid sharding.  Both convs rely on it.
    zrow = jnp.zeros((bt, 1, WC), pad_ref.dtype)
    pad_ref[:, 0:1, :] = zrow
    pad_ref[:, H + 1:H + 2, :] = zrow

    # bn1 (folded inference affine) + relu, f32 on the VPU, lane-dense.
    x = x_ref[...].astype(jnp.float32)
    a = jnp.maximum(x * s1_ref[...] + b1_ref[...], 0.0)

    # Identity (stride=1, upsample=None) parked in the resident output block.
    # (Exact round trip because the output dtype is f32 here.)
    o_ref[...] = a.astype(o_ref.dtype)

    # conv1: 3x3 ConvTranspose (stride=1, pad=1) == conv3x3 with IO-swapped,
    # spatially flipped weight (already folded into wb1 by the wrapper).
    h = _conv3x3_banded(a, wb1_ref, pad_ref)                  # (bt, H, W*Cout) f32

    # TODO(synk): dropout omitted (dropout_rate=0 default -> identity at inference)

    # bn2 + relu (f32).
    h = jnp.maximum(h * s2_ref[...] + b2_ref[...], 0.0)

    # conv2: regular 3x3 conv, same banded path (reuses pad_ref; Cin == Cout).
    h = _conv3x3_banded(h, wb2_ref, pad_ref)

    # residual add (identity read back from the output block) + store.
    o_ref[...] = (h + o_ref[...].astype(jnp.float32)).astype(o_ref.dtype)


# ---------------------------------------------------------------------------
# Weight preprocessing
# ---------------------------------------------------------------------------
def _banded_weights(w_hwio, W, dtype):
    """Fold kx taps + W zero-padding of a 3x3 conv into per-ky banded matrices.

    w_hwio: (3, 3, Ci, Co) cross-correlation weights.
    Returns wb of shape (3, W*Ci, W*Co) with
      wb[ky, wp*Ci + ci, w*Co + co] = w_hwio[ky, wp - w + 1, ci, co]
    when 0 <= wp - w + 1 <= 2, else 0.  Then a plain matmul of the (W*Ci)-wide
    activation row band against wb[ky] performs the kx sweep of the conv.
    """
    kh, kw, Ci, Co = w_hwio.shape
    wp = jnp.arange(W)[:, None]
    w_ = jnp.arange(W)[None, :]
    kx = wp - w_ + 1                                     # (W, W)
    valid = (kx >= 0) & (kx <= 2)
    kx_c = jnp.clip(kx, 0, 2)
    blocks = w_hwio[:, kx_c]                             # (3, W, W, Ci, Co)
    blocks = jnp.where(valid[None, :, :, None, None], blocks, 0.0)
    wb = blocks.transpose(0, 1, 3, 2, 4).reshape(kh, W * Ci, W * Co)
    return wb.astype(dtype)


# ---------------------------------------------------------------------------
# Wrappers
# ---------------------------------------------------------------------------
def transpose_preact_block_pallas_nhwc(x_nhwc, params, *, batch_tile=None,
                                       compute_dtype=jnp.bfloat16, eps=1e-5):
    """Primary (layout-friendly) entry point.  x_nhwc: (N, H, W, Cin) f32."""
    N, H, W, Cin = x_nhwc.shape
    Cout = params["w1"].shape[1]                 # ConvTranspose2d w: (Cin, Cout, 3, 3)
    assert params["w1"].shape[0] == Cin
    assert Cin == Cout, "residual add needs inplanes == planes (upsample=None path)"

    csz = jnp.dtype(compute_dtype).itemsize
    xsz = jnp.dtype(x_nhwc.dtype).itemsize

    # Banded-weight regime guard (weights grow as (W*C)^2 per ky per conv).
    w_bytes = (3 * (W * Cin) * (W * Cout) + 3 * (W * Cout) * (W * Cout)) * csz
    assert w_bytes <= 16 * (1 << 20), (
        "banded-weight path is for the small-C / small-W*C regime; "
        "use a fused-im2col K=9C matmul for large channel counts")

    # Per-step VMEM footprint of one image (in/out double-buffered + pad scratch).
    per_img = H * W * Cin * (2 * xsz + 2 * xsz) + (H + 2) * W * Cin * csz

    if batch_tile is None:
        batch_tile = 1
        for cand in range(1, N + 1):
            if N % cand:
                continue
            if N // cand < 4 and cand != 1:      # keep >= 4 grid steps when possible
                continue
            if cand * per_img > 8 * (1 << 20):   # cap activation footprint
                continue
            batch_tile = cand
    assert N % batch_tile == 0, "batch_tile must divide the batch size"
    bt = batch_tile

    # Fold BatchNorm (inference) into per-channel scale/shift, in f32, and
    # tile across W for the lane-dense (W*C) layout.
    s1 = (params["g1"] / jnp.sqrt(params["v1"] + eps)).astype(jnp.float32)
    b1 = (params["b1"] - params["m1"] * s1).astype(jnp.float32)
    s2 = (params["g2"] / jnp.sqrt(params["v2"] + eps)).astype(jnp.float32)
    b2 = (params["b2"] - params["m2"] * s2).astype(jnp.float32)
    s1t = jnp.tile(s1, W).reshape(1, 1, W * Cin)
    b1t = jnp.tile(b1, W).reshape(1, 1, W * Cin)
    s2t = jnp.tile(s2, W).reshape(1, 1, W * Cout)
    b2t = jnp.tile(b2, W).reshape(1, 1, W * Cout)

    # conv1 weight: ConvTranspose2d (Cin, Cout, 3, 3); at stride=1/pad=1 it is a
    # regular conv3x3 with the weight IO-swapped and spatially flipped.
    # conv2 weight: Conv2d (Cout, Cin, 3, 3).  Both become banded matrices.
    w1_hwio = jnp.transpose(params["w1"][:, :, ::-1, ::-1], (2, 3, 0, 1))  # (3,3,Cin,Cout)
    w2_hwio = jnp.transpose(params["w2"], (2, 3, 1, 0))                    # (3,3,Cout,Cout)
    wb1 = _banded_weights(w1_hwio, W, compute_dtype)     # (3, W*Cin,  W*Cout)
    wb2 = _banded_weights(w2_hwio, W, compute_dtype)     # (3, W*Cout, W*Cout)

    # Lane-dense view of the activations: free row-major reshape, C stays minor.
    xf = x_nhwc.reshape(N, H, W * Cin)

    # Explicit scoped-VMEM budget: 2x double-buffered in/out blocks + weights +
    # scale/shift (conservatively x2) + pad scratch, with margin.
    blk = bt * H * W * Cin * xsz
    s_bytes = 2 * (W * Cin + W * Cout) * 4
    pad_bytes = bt * (H + 2) * W * Cin * csz
    est = 2 * blk + 2 * blk + 2 * (w_bytes + s_bytes) + pad_bytes
    vmem_limit = int(min(100 * (1 << 20), max(32 * (1 << 20), 2 * est)))

    flops = 2 * 2 * (N * H * W) * (9 * Cin) * Cout       # two convs, useful MACs*2
    bytes_accessed = (xf.size * xsz + N * H * W * Cout * xsz
                      + (wb1.size + wb2.size) * csz + 4 * s_bytes)

    def const(shape):
        return pl.BlockSpec(shape, lambda n, _nd=len(shape): (0,) * _nd)

    out = pl.pallas_call(
        transpose_preact_block_kernel,
        out_shape=jax.ShapeDtypeStruct((N, H, W * Cout), x_nhwc.dtype),
        grid=(N // bt,),
        in_specs=[
            pl.BlockSpec((bt, H, W * Cin), lambda n: (n, 0, 0)),
            const((1, 1, W * Cin)), const((1, 1, W * Cin)),
            const((3, W * Cin, W * Cout)),
            const((1, 1, W * Cout)), const((1, 1, W * Cout)),
            const((3, W * Cout, W * Cout)),
        ],
        out_specs=pl.BlockSpec((bt, H, W * Cout), lambda n: (n, 0, 0)),
        scratch_shapes=[
            pltpu.VMEM((bt, H + 2, W * Cin), compute_dtype),  # H-padded activations
        ],
        compiler_params=pltpu.CompilerParams(
            dimension_semantics=("parallel",),
            vmem_limit_bytes=vmem_limit),
        cost_estimate=pl.CostEstimate(flops=flops, transcendentals=0,
                                      bytes_accessed=bytes_accessed),
    )(xf, s1t, b1t, wb1, s2t, b2t, wb2)

    return out.reshape(N, H, W, Cout)


def transpose_preact_block_pallas(x_nchw, params, **kwargs):
    """NCHW convenience wrapper matching the PyTorch module layout.

    NOTE: the two transposes below are full HBM round trips outside the kernel;
    keep the surrounding model NHWC and call transpose_preact_block_pallas_nhwc
    directly to avoid them.
    """
    x = jnp.transpose(x_nchw, (0, 2, 3, 1))          # NCHW -> NHWC
    y = transpose_preact_block_pallas_nhwc(x, params, **kwargs)
    return jnp.transpose(y, (0, 3, 1, 2))            # NHWC -> NCHW


# ---------------------------------------------------------------------------
# Pure-JAX reference
# ---------------------------------------------------------------------------
def transpose_preact_block_ref(x_nchw, params, eps=1e-5):
    """Pure-JAX reference; conv1 written directly from the ConvTranspose2d definition."""
    x = jnp.transpose(x_nchw, (0, 2, 3, 1))
    N, H, W, Cin = x.shape
    s1 = params["g1"] / jnp.sqrt(params["v1"] + eps)
    b1 = params["b1"] - params["m1"] * s1
    s2 = params["g2"] / jnp.sqrt(params["v2"] + eps)
    b2 = params["b2"] - params["m2"] * s2

    a = jnp.maximum(x * s1 + b1, 0.0)
    identity = a

    # conv1 = F.conv_transpose2d(a, w1, stride=1, padding=1), by definition:
    #   y[n,i,j,co] = sum_{ky,kx,ci} a[n, i+1-ky, j+1-kx, ci] * w1[ci, co, ky, kx]
    w1 = params["w1"]                                  # (Cin, Cout, 3, 3)
    ap = jnp.pad(a, ((0, 0), (1, 1), (1, 1), (0, 0)))
    h = jnp.zeros((N, H, W, w1.shape[1]), jnp.float32)
    for ky in range(3):
        for kx in range(3):
            patch = ap[:, 2 - ky:2 - ky + H, 2 - kx:2 - kx + W, :]
            h = h + jnp.einsum("nhwc,cd->nhwd", patch, w1[:, :, ky, kx],
                               precision=jax.lax.Precision.HIGHEST)

    h = jnp.maximum(h * s2 + b2, 0.0)

    # conv2 = regular 3x3 conv, stride=1, pad=1 (cross-correlation).
    w2_hwio = jnp.transpose(params["w2"], (2, 3, 1, 0))
    h = jax.lax.conv_general_dilated(
        h, w2_hwio, window_strides=(1, 1), padding="SAME",
        dimension_numbers=("NHWC", "HWIO", "NHWC"),
        precision=jax.lax.Precision.HIGHEST)

    out = h + identity
    return jnp.transpose(out, (0, 3, 1, 2))


# ---------------------------------------------------------------------------
# Self-test
# ---------------------------------------------------------------------------
if __name__ == "__main__":
    key = jax.random.PRNGKey(0)
    N, C, H, W = 4, 8, 16, 16                  # inplanes == planes == 8; W*C = 128
    ks = jax.random.split(key, 11)

    x = jax.random.normal(ks[0], (N, C, H, W), jnp.float32)
    params = {
        # bn1 (inference stats)
        "g1": 1.0 + 0.1 * jax.random.normal(ks[1], (C,), jnp.float32),
        "b1": 0.1 * jax.random.normal(ks[2], (C,), jnp.float32),
        "m1": 0.1 * jax.random.normal(ks[3], (C,), jnp.float32),
        "v1": 1.0 + 0.1 * jax.random.uniform(ks[4], (C,), jnp.float32),
        # conv1: ConvTranspose2d weight (Cin, Cout, 3, 3)
        "w1": 0.1 * jax.random.normal(ks[5], (C, C, 3, 3), jnp.float32),
        # bn2
        "g2": 1.0 + 0.1 * jax.random.normal(ks[6], (C,), jnp.float32),
        "b2": 0.1 * jax.random.normal(ks[7], (C,), jnp.float32),
        "m2": 0.1 * jax.random.normal(ks[8], (C,), jnp.float32),
        "v2": 1.0 + 0.1 * jax.random.uniform(ks[9], (C,), jnp.float32),
        # conv2: Conv2d weight (Cout, Cin, 3, 3)
        "w2": 0.1 * jax.random.normal(ks[10], (C, C, 3, 3), jnp.float32),
    }

    ref = transpose_preact_block_ref(x, params)

    # f32 MXU operands, auto batch_tile (bt=1 -> grid of 4 steps).
    out_f32 = jax.block_until_ready(
        transpose_preact_block_pallas(x, params, compute_dtype=jnp.float32))
    assert out_f32.shape == (N, C, H, W)
    assert jnp.allclose(out_f32, ref, atol=5e-4, rtol=5e-4), \
        f"f32 max abs diff {jnp.max(jnp.abs(out_f32 - ref))}"

    # bf16 MXU operands (default; f32 accumulation, f32 BN/ReLU/residual),
    # explicit batch_tile=2 to exercise the batched path.
    out_bf16 = jax.block_until_ready(
        transpose_preact_block_pallas(x, params, batch_tile=2))
    assert jnp.allclose(out_bf16, ref, atol=6e-2, rtol=6e-2), \
        f"bf16 max abs diff {jnp.max(jnp.abs(out_bf16 - ref))}"

    print("KERNEL_OK")
</pallas_src>

<mosaic_0001>
module attributes {stable_mosaic.version = 11 : i64} {
  func.func @transpose_preact_block_kernel(%arg0: i32, %arg1: memref<1x16x128xf32, #tpu.memory_space<vmem>>, %arg2: memref<1x1x128xf32, #tpu.memory_space<vmem>>, %arg3: memref<1x1x128xf32, #tpu.memory_space<vmem>>, %arg4: memref<3x128x128xf32, #tpu.memory_space<vmem>>, %arg5: memref<1x1x128xf32, #tpu.memory_space<vmem>>, %arg6: memref<1x1x128xf32, #tpu.memory_space<vmem>>, %arg7: memref<3x128x128xf32, #tpu.memory_space<vmem>>, %arg8: memref<1x16x128xf32, #tpu.memory_space<vmem>>, %arg9: memref<1x18x128xf32, #tpu.memory_space<vmem>>) attributes {dimension_semantics = [#tpu.dimension_semantics<parallel>], iteration_bounds = array<i64: 4>, scalar_prefetch = 0 : i64, scratch_operands = 1 : i64, tpu.core_type = #tpu.core_type<tc>, window_params = [{transform_indices = @transform_0, window_bounds = array<i64: 1, 16, 128>}, {pipeline_mode = #tpu.pipeline_mode<synchronous>, transform_indices = @transform_1, window_bounds = array<i64: 1, 1, 128>}, {pipeline_mode = #tpu.pipeline_mode<synchronous>, transform_indices = @transform_2, window_bounds = array<i64: 1, 1, 128>}, {pipeline_mode = #tpu.pipeline_mode<synchronous>, transform_indices = @transform_3, window_bounds = array<i64: 3, 128, 128>}, {pipeline_mode = #tpu.pipeline_mode<synchronous>, transform_indices = @transform_4, window_bounds = array<i64: 1, 1, 128>}, {pipeline_mode = #tpu.pipeline_mode<synchronous>, transform_indices = @transform_5, window_bounds = array<i64: 1, 1, 128>}, {pipeline_mode = #tpu.pipeline_mode<synchronous>, transform_indices = @transform_6, window_bounds = array<i64: 3, 128, 128>}, {transform_indices = @transform_7, window_bounds = array<i64: 1, 16, 128>}]} {
    %cst = arith.constant 0.000000e+00 : f32
    %0 = vector.broadcast %cst : f32 to vector<1x1x128xf32>
    %c0 = arith.constant 0 : index
    %c0_0 = arith.constant 0 : index
    %c0_1 = arith.constant 0 : index
    %1 = vector.load %arg9[%c0, %c0_0, %c0_1] : memref<1x18x128xf32, #tpu.memory_space<vmem>>, vector<1x1x128xf32>
    tpu.vector_store %arg9[%c0, %c0_0, %c0_1], %0 {strides = array<i32>} : memref<1x18x128xf32, #tpu.memory_space<vmem>>, vector<1x1x128xf32>,
    %c0_2 = arith.constant 0 : index
    %c17 = arith.constant 17 : index
    %c0_3 = arith.constant 0 : index
    %2 = vector.load %arg9[%c0_2, %c17, %c0_3] : memref<1x18x128xf32, #tpu.memory_space<vmem>>, vector<1x1x128xf32>
    tpu.vector_store %arg9[%c0_2, %c17, %c0_3], %0 {strides = array<i32>} : memref<1x18x128xf32, #tpu.memory_space<vmem>>, vector<1x1x128xf32>,
    %c0_4 = arith.constant 0 : index
    %c0_5 = arith.constant 0 : index
    %c0_6 = arith.constant 0 : index
    %3 = vector.load %arg1[%c0_4, %c0_5, %c0_6] : memref<1x16x128xf32, #tpu.memory_space<vmem>>, vector<1x16x128xf32>
    %c0_7 = arith.constant 0 : index
    %c0_8 = arith.constant 0 : index
    %c0_9 = arith.constant 0 : index
    %4 = vector.load %arg2[%c0_7, %c0_8, %c0_9] : memref<1x1x128xf32, #tpu.memory_space<vmem>>, vector<1x1x128xf32>
    %5 = vector.broadcast %4 : vector<1x1x128xf32> to vector<1x16x128xf32>
    %6 = arith.mulf %3, %5 : vector<1x16x128xf32>
    %c0_10 = arith.constant 0 : index
    %c0_11 = arith.constant 0 : index
    %c0_12 = arith.constant 0 : index
    %7 = vector.load %arg3[%c0_10, %c0_11, %c0_12] : memref<1x1x128xf32, #tpu.memory_space<vmem>>, vector<1x1x128xf32>
    %8 = vector.broadcast %7 : vector<1x1x128xf32> to vector<1x16x128xf32>
    %9 = arith.addf %6, %8 : vector<1x16x128xf32>
    %cst_13 = arith.constant 0.000000e+00 : f32
    %10 = vector.broadcast %cst_13 : f32 to vector<1x16x128xf32>
    %11 = arith.maximumf %9, %10 : vector<1x16x128xf32>
    %c0_14 = arith.constant 0 : index
    %c0_15 = arith.constant 0 : index
    %c0_16 = arith.constant 0 : index
    %12 = vector.load %arg8[%c0_14, %c0_15, %c0_16] : memref<1x16x128xf32, #tpu.memory_space<vmem>>, vector<1x16x128xf32>
    tpu.vector_store %arg8[%c0_14, %c0_15, %c0_16], %11 {strides = array<i32>} : memref<1x16x128xf32, #tpu.memory_space<vmem>>, vector<1x16x128xf32>,
    %c0_17 = arith.constant 0 : index
    %c1 = arith.constant 1 : index
    %c0_18 = arith.constant 0 : index
    %13 = vector.load %arg9[%c0_17, %c1, %c0_18] : memref<1x18x128xf32, #tpu.memory_space<vmem>>, vector<1x16x128xf32>
    tpu.vector_store %arg9[%c0_17, %c1, %c0_18], %11 {strides = array<i32>} : memref<1x18x128xf32, #tpu.memory_space<vmem>>, vector<1x16x128xf32>,
    %c0_19 = arith.constant 0 : index
    %c0_20 = arith.constant 0 : index
    %c0_21 = arith.constant 0 : index
    %14 = vector.load %arg9[%c0_19, %c0_20, %c0_21] : memref<1x18x128xf32, #tpu.memory_space<vmem>>, vector<1x16x128xf32>
    %15 = vector.shape_cast %14 : vector<1x16x128xf32> to vector<16x128xf32>
    %c0_22 = arith.constant 0 : index
    %c0_23 = arith.constant 0 : index
    %c0_24 = arith.constant 0 : index
    %16 = vector.load %arg4[%c0_22, %c0_23, %c0_24] : memref<3x128x128xf32, #tpu.memory_space<vmem>>, vector<1x128x128xf32>
    %17 = vector.shape_cast %16 : vector<1x128x128xf32> to vector<128x128xf32>
    %cst_25 = arith.constant dense<0.000000e+00> : vector<16x128xf32>
    %18 = tpu.matmul %15, %17, %cst_25 {dimension_numbers = #tpu.dot_dimension_numbers<[1], [0], [0], [1], [0, 0, 1, 1], [], []>} : vector<16x128xf32>, vector<128x128xf32>, vector<16x128xf32> -> vector<16x128xf32>
    %c0_26 = arith.constant 0 : index
    %c1_27 = arith.constant 1 : index
    %c0_28 = arith.constant 0 : index
    %19 = vector.load %arg9[%c0_26, %c1_27, %c0_28] : memref<1x18x128xf32, #tpu.memory_space<vmem>>, vector<1x16x128xf32>
    %20 = vector.shape_cast %19 : vector<1x16x128xf32> to vector<16x128xf32>
    %c1_29 = arith.constant 1 : index
    %c0_30 = arith.constant 0 : index
    %c0_31 = arith.constant 0 : index
    %21 = vector.load %arg4[%c1_29, %c0_30, %c0_31] : memref<3x128x128xf32, #tpu.memory_space<vmem>>, vector<1x128x128xf32>
    %22 = vector.shape_cast %21 : vector<1x128x128xf32> to vector<128x128xf32>
    %cst_32 = arith.constant dense<0.000000e+00> : vector<16x128xf32>
    %23 = tpu.matmul %20, %22, %cst_32 {dimension_numbers = #tpu.dot_dimension_numbers<[1], [0], [0], [1], [0, 0, 1, 1], [], []>} : vector<16x128xf32>, vector<128x128xf32>, vector<16x128xf32> -> vector<16x128xf32>
    %24 = arith.addf %18, %23 : vector<16x128xf32>
    %c0_33 = arith.constant 0 : index
    %c2 = arith.constant 2 : index
    %c0_34 = arith.constant 0 : index
    %25 = vector.load %arg9[%c0_33, %c2, %c0_34] : memref<1x18x128xf32, #tpu.memory_space<vmem>>, vector<1x16x128xf32>
    %26 = vector.shape_cast %25 : vector<1x16x128xf32> to vector<16x128xf32>
    %c2_35 = arith.constant 2 : index
    %c0_36 = arith.constant 0 : index
    %c0_37 = arith.constant 0 : index
    %27 = vector.load %arg4[%c2_35, %c0_36, %c0_37] : memref<3x128x128xf32, #tpu.memory_space<vmem>>, vector<1x128x128xf32>
    %28 = vector.shape_cast %27 : vector<1x128x128xf32> to vector<128x128xf32>
    %cst_38 = arith.constant dense<0.000000e+00> : vector<16x128xf32>
    %29 = tpu.matmul %26, %28, %cst_38 {dimension_numbers = #tpu.dot_dimension_numbers<[1], [0], [0], [1], [0, 0, 1, 1], [], []>} : vector<16x128xf32>, vector<128x128xf32>, vector<16x128xf32> -> vector<16x128xf32>
    %30 = arith.addf %24, %29 : vector<16x128xf32>
    %31 = vector.shape_cast %30 : vector<16x128xf32> to vector<1x16x128xf32>
    %c0_39 = arith.constant 0 : index
    %c0_40 = arith.constant 0 : index
    %c0_41 = arith.constant 0 : index
    %32 = vector.load %arg5[%c0_39, %c0_40, %c0_41] : memref<1x1x128xf32, #tpu.memory_space<vmem>>, vector<1x1x128xf32>
    %33 = vector.broadcast %32 : vector<1x1x128xf32> to vector<1x16x128xf32>
    %34 = arith.mulf %31, %33 : vector<1x16x128xf32>
    %c0_42 = arith.constant 0 : index
    %c0_43 = arith.constant 0 : index
    %c0_44 = arith.constant 0 : index
    %35 = vector.load %arg6[%c0_42, %c0_43, %c0_44] : memref<1x1x128xf32, #tpu.memory_space<vmem>>, vector<1x1x128xf32>
    %36 = vector.broadcast %35 : vector<1x1x128xf32> to vector<1x16x128xf32>
    %37 = arith.addf %34, %36 : vector<1x16x128xf32>
    %cst_45 = arith.constant 0.000000e+00 : f32
    %38 = vector.broadcast %cst_45 : f32 to vector<1x16x128xf32>
    %39 = arith.maximumf %37, %38 : vector<1x16x128xf32>
    %c0_46 = arith.constant 0 : index
    %c1_47 = arith.constant 1 : index
    %c0_48 = arith.constant 0 : index
    %40 = vector.load %arg9[%c0_46, %c1_47, %c0_48] : memref<1x18x128xf32, #tpu.memory_space<vmem>>, vector<1x16x128xf32>
    tpu.vector_store %arg9[%c0_46, %c1_47, %c0_48], %39 {strides = array<i32>} : memref<1x18x128xf32, #tpu.memory_space<vmem>>, vector<1x16x128xf32>,
    %c0_49 = arith.constant 0 : index
    %c0_50 = arith.constant 0 : index
    %c0_51 = arith.constant 0 : index
    %41 = vector.load %arg9[%c0_49, %c0_50, %c0_51] : memref<1x18x128xf32, #tpu.memory_space<vmem>>, vector<1x16x128xf32>
    %42 = vector.shape_cast %41 : vector<1x16x128xf32> to vector<16x128xf32>
    %c0_52 = arith.constant 0 : index
    %c0_53 = arith.constant 0 : index
    %c0_54 = arith.constant 0 : index
    %43 = vector.load %arg7[%c0_52, %c0_53, %c0_54] : memref<3x128x128xf32, #tpu.memory_space<vmem>>, vector<1x128x128xf32>
    %44 = vector.shape_cast %43 : vector<1x128x128xf32> to vector<128x128xf32>
    %cst_55 = arith.constant dense<0.000000e+00> : vector<16x128xf32>
    %45 = tpu.matmul %42, %44, %cst_55 {dimension_numbers = #tpu.dot_dimension_numbers<[1], [0], [0], [1], [0, 0, 1, 1], [], []>} : vector<16x128xf32>, vector<128x128xf32>, vector<16x128xf32> -> vector<16x128xf32>
    %c0_56 = arith.constant 0 : index
    %c1_57 = arith.constant 1 : index
    %c0_58 = arith.constant 0 : index
    %46 = vector.load %arg9[%c0_56, %c1_57, %c0_58] : memref<1x18x128xf32, #tpu.memory_space<vmem>>, vector<1x16x128xf32>
    %47 = vector.shape_cast %46 : vector<1x16x128xf32> to vector<16x128xf32>
    %c1_59 = arith.constant 1 : index
    %c0_60 = arith.constant 0 : index
    %c0_61 = arith.constant 0 : index
    %48 = vector.load %arg7[%c1_59, %c0_60, %c0_61] : memref<3x128x128xf32, #tpu.memory_space<vmem>>, vector<1x128x128xf32>
    %49 = vector.shape_cast %48 : vector<1x128x128xf32> to vector<128x128xf32>
    %cst_62 = arith.constant dense<0.000000e+00> : vector<16x128xf32>
    %50 = tpu.matmul %47, %49, %cst_62 {dimension_numbers = #tpu.dot_dimension_numbers<[1], [0], [0], [1], [0, 0, 1, 1], [], []>} : vector<16x128xf32>, vector<128x128xf32>, vector<16x128xf32> -> vector<16x128xf32>
    %51 = arith.addf %45, %50 : vector<16x128xf32>
    %c0_63 = arith.constant 0 : index
    %c2_64 = arith.constant 2 : index
    %c0_65 = arith.constant 0 : index
    %52 = vector.load %arg9[%c0_63, %c2_64, %c0_65] : memref<1x18x128xf32, #tpu.memory_space<vmem>>, vector<1x16x128xf32>
    %53 = vector.shape_cast %52 : vector<1x16x128xf32> to vector<16x128xf32>
    %c2_66 = arith.constant 2 : index
    %c0_67 = arith.constant 0 : index
    %c0_68 = arith.constant 0 : index
    %54 = vector.load %arg7[%c2_66, %c0_67, %c0_68] : memref<3x128x128xf32, #tpu.memory_space<vmem>>, vector<1x128x128xf32>
    %55 = vector.shape_cast %54 : vector<1x128x128xf32> to vector<128x128xf32>
    %cst_69 = arith.constant dense<0.000000e+00> : vector<16x128xf32>
    %56 = tpu.matmul %53, %55, %cst_69 {dimension_numbers = #tpu.dot_dimension_numbers<[1], [0], [0], [1], [0, 0, 1, 1], [], []>} : vector<16x128xf32>, vector<128x128xf32>, vector<16x128xf32> -> vector<16x128xf32>
    %57 = arith.addf %51, %56 : vector<16x128xf32>
    %58 = vector.shape_cast %57 : vector<16x128xf32> to vector<1x16x128xf32>
    %c0_70 = arith.constant 0 : index
    %c0_71 = arith.constant 0 : index
    %c0_72 = arith.constant 0 : index
    %59 = vector.load %arg8[%c0_70, %c0_71, %c0_72] : memref<1x16x128xf32, #tpu.memory_space<vmem>>, vector<1x16x128xf32>
    %60 = arith.addf %58, %59 : vector<1x16x128xf32>
    %c0_73 = arith.constant 0 : index
    %c0_74 = arith.constant 0 : index
    %c0_75 = arith.constant 0 : index
    %61 = vector.load %arg8[%c0_73, %c0_74, %c0_75] : memref<1x16x128xf32, #tpu.memory_space<vmem>>, vector<1x16x128xf32>
    tpu.vector_store %arg8[%c0_73, %c0_74, %c0_75], %60 {strides = array<i32>} : memref<1x16x128xf32, #tpu.memory_space<vmem>>, vector<1x16x128xf32>,
    return
  }
  func.func @transform_0(%arg0: i32) -> (i32, i32, i32) {
    %c0_i32 = arith.constant 0 : i32
    %c0_i32_0 = arith.constant 0 : i32
    %c0_i32_1 = arith.constant 0 : i32
    return %arg0, %c0_i32, %c0_i32_0 : i32, i32, i32
  }
  func.func @transform_1(%arg0: i32) -> (i32, i32, i32) {
    %c0_i32 = arith.constant 0 : i32
    %c0_i32_0 = arith.constant 0 : i32
    %c0_i32_1 = arith.constant 0 : i32
    %c0_i32_2 = arith.constant 0 : i32
    return %c0_i32, %c0_i32_0, %c0_i32_1 : i32, i32, i32
  }
  func.func @transform_2(%arg0: i32) -> (i32, i32, i32) {
    %c0_i32 = arith.constant 0 : i32
    %c0_i32_0 = arith.constant 0 : i32
    %c0_i32_1 = arith.constant 0 : i32
    %c0_i32_2 = arith.constant 0 : i32
    return %c0_i32, %c0_i32_0, %c0_i32_1 : i32, i32, i32
  }
  func.func @transform_3(%arg0: i32) -> (i32, i32, i32) {
    %c0_i32 = arith.constant 0 : i32
    %c0_i32_0 = arith.constant 0 : i32
    %c0_i32_1 = arith.constant 0 : i32
    %c0_i32_2 = arith.constant 0 : i32
    return %c0_i32, %c0_i32_0, %c0_i32_1 : i32, i32, i32
  }
  func.func @transform_4(%arg0: i32) -> (i32, i32, i32) {
    %c0_i32 = arith.constant 0 : i32
    %c0_i32_0 = arith.constant 0 : i32
    %c0_i32_1 = arith.constant 0 : i32
    %c0_i32_2 = arith.constant 0 : i32
    return %c0_i32, %c0_i32_0, %c0_i32_1 : i32, i32, i32
  }
  func.func @transform_5(%arg0: i32) -> (i32, i32, i32) {
    %c0_i32 = arith.constant 0 : i32
    %c0_i32_0 = arith.constant 0 : i32
    %c0_i32_1 = arith.constant 0 : i32
    %c0_i32_2 = arith.constant 0 : i32
    return %c0_i32, %c0_i32_0, %c0_i32_1 : i32, i32, i32
  }
  func.func @transform_6(%arg0: i32) -> (i32, i32, i32) {
    %c0_i32 = arith.constant 0 : i32
    %c0_i32_0 = arith.constant 0 : i32
    %c0_i32_1 = arith.constant 0 : i32
    %c0_i32_2 = arith.constant 0 : i32
    return %c0_i32, %c0_i32_0, %c0_i32_1 : i32, i32, i32
  }
  func.func @transform_7(%arg0: i32) -> (i32, i32, i32) {
    %c0_i32 = arith.constant 0 : i32
    %c0_i32_0 = arith.constant 0 : i32
    %c0_i32_1 = arith.constant 0 : i32
    return %arg0, %c0_i32, %c0_i32_0 : i32, i32, i32
  }
}

</mosaic_0001>

<llo_original>
// kernel: tpu_custom_call.1
$region0: #{tpu_custom_call.1}
  #allocation0 [shape = 'u32[]', space=smem, size = 0x4, offset = 0x4, fixed_abs, tag = 'smem constant byte address 0x4 - core index']
  #allocation1 [shape = 'u32[144,128]{1,0:T(1,128)}', space=vmem, size = 0x12000, scoped, tag = 'internal scratch']
  #allocation2 [shape = 'f32[1,18,128]{2,1,0:T(8,128)}', space=vmem, size = 0x3000, scoped, tag = 'scratch operand']
  %s0 = inlined_call_operand.hbm [shape: f32[4,16,128], index: 0, kind: input, shape index: {}]
  %s1 = inlined_call_operand.vmem [shape: f32[1,1,128], index: 1, kind: input, shape index: {}]
  %s2 = inlined_call_operand.vmem [shape: f32[1,1,128], index: 2, kind: input, shape index: {}]
  %s3 = inlined_call_operand.hbm [shape: f32[3,128,128], index: 3, kind: input, shape index: {}]
  %s4 = inlined_call_operand.vmem [shape: f32[1,1,128], index: 4, kind: input, shape index: {}]
  %s5 = inlined_call_operand.vmem [shape: f32[1,1,128], index: 5, kind: input, shape index: {}]
  %s6 = inlined_call_operand.hbm [shape: f32[3,128,128], index: 6, kind: input, shape index: {}]
  %s7 = inlined_call_operand.hbm [shape: f32[4,16,128], index: 7, kind: output, shape index: {}]
  %s8 = sld [smem:[#allocation0]]
  $region73: #{tpu_custom_call.1} parent=0
    _
  %s10 = ssub.s32 1, %s8
  %s11 = scalar_select 0, %s10, %s8
  $region1: #{tpu_custom_call.1} parent=0
    #allocation3 [shape = 'u8[16384]{0}', space=vmem, size = 0x4000, scoped, tag = 'input window, operand 0']
    #allocation4 [shape = 's32[2]{0}', space=sflag, size = 0x8, scoped, tag = 'scoped memory for tpu_custom_call.1']
    #allocation5 [shape = 's32[2]{0}', space=sflag, size = 0x8, scoped, tag = 'scoped memory for tpu_custom_call.1']
    #allocation6 [shape = 'u8[196608]{0}', space=vmem, size = 0x30000, scoped, tag = 'input window, operand 3, single buffered']
    #allocation7 [shape = 's32[1]{0}', space=sflag, size = 0x4, scoped, tag = 'scoped memory for tpu_custom_call.1']
    #allocation8 [shape = 'u8[196608]{0}', space=vmem, size = 0x30000, scoped, tag = 'input window, operand 6, single buffered']
    #allocation9 [shape = 'u8[16384]{0}', space=vmem, size = 0x4000, scoped, tag = 'output window, operand 0']
    %12 = vsyncpa [#allocation4], 0
    %s13 = scalar_lea.sflag [#allocation4], 1
    %14 = vsyncpa %s13, 0
    %15 = vsyncpa [#allocation7], 0
    %16 = vsyncpa [#allocation5], 0
    %s17 = scalar_lea.sflag [#allocation5], 1
    %18 = vsyncpa %s17, 0
    loop: start=0, step=1, limit=6
    $region2: #{tpu_custom_call.1} parent=1 // loop_pre_header
      _
    $region3: #{tpu_custom_call.1} parent=1 // loop_header
      %s20 = sphi 0, %s24
      %p21 = scmp.ge.s32.totalorder %s20, 6
      %s30 = sphi 0, %s32
      %s33 = sphi 0, %s30
      %s34 = sphi 0, %s33
      %s50 = sphi 0, %s34
      %s54 = sphi 0, %s54
      %s56 = sphi 0, %s54
      %s57 = sphi 0, %s56
      %s71 = sphi 0, %s57
      %s75 = sphi 0, %s75
      %s77 = sphi 0, %s75
      %s78 = sphi 0, %s77
      %s92 = sphi 0, %s78
      %s96 = sphi 0, %s96
      %s98 = sphi 0, %s96
      %s99 = sphi 0, %s98
      %s113 = sphi 0, %s99
      %s117 = sphi 0, %s117
      %s119 = sphi 0, %s117
      %s120 = sphi 0, %s119
      %s134 = sphi 0, %s120
      %s138 = sphi 0, %s138
      %s140 = sphi 0, %s138
      %s141 = sphi 0, %s140
      %s155 = sphi 0, %s141
      %s159 = sphi 0, %s159
      %s161 = sphi 0, %s159
      %s162 = sphi 0, %s161
      %s176 = sphi 0, %s162
      %s182 = sphi 0, %s184
      %s185 = sphi 0, %s182
      %s186 = sphi 0, %s185
      %s202 = sphi 0, %s186
    $region4: #{tpu_custom_call.1} parent=1 // loop_header_branch
      %23 = sbr.rel (%p21) target = $region8
    $region5: #{tpu_custom_call.1} parent=1 // loop_body
      %s25 = ssub.s32 %s20, 1
      %s26 = ssub.s32 %s20, 2
      %s27 = sadd.s32 %s20, 1
      %s28 = ssub.s32 %s20, %s27
      %p29 = scmp.eq.s32.totalorder %s28, 0
      %s31 = sadd.s32 %s30, 1
      %s32 = scalar_select %p29, %s30, %s31
      %p35 = pneg %p29
      %p36 = scmp.eq.s32.totalorder %s20, 3
      %p37 = por %p35, %p36
      %p38 = scmp.ne.s32.totalorder %s30, %s33
      %p39 = scmp.eq.s32.totalorder %s20, 0
      %p40 = por %p38, %p39
      %p41 = scmp.ne.s32.totalorder %s30, %s33
      %p42 = scmp.eq.s32.totalorder %s25, 3
      %p43 = por %p41, %p42
      %p44 = scmp.ne.s32.totalorder %s33, %s34
      %p45 = scmp.eq.s32.totalorder %s25, 0
      %p46 = por %p44, %p45
      %p47 = scmp.ne.s32.totalorder %s33, %s34
      %p48 = scmp.eq.s32.totalorder %s26, 3
      %p49 = por %p47, %p48
      %p51 = scmp.ne.s32.totalorder %s34, %s50
      %p52 = scmp.eq.s32.totalorder %s26, 0
      %p53 = por %p51, %p52
      %s55 = sadd.s32 %s54, 1
      %p58 = scmp.eq.s32.totalorder %s20, 3
      %p59 = scmp.ne.s32.totalorder %s54, %s56
      %p60 = scmp.eq.s32.totalorder %s20, 0
      %p61 = por %p59, %p60
      %p62 = scmp.ne.s32.totalorder %s54, %s56
      %p63 = scmp.eq.s32.totalorder %s25, 3
      %p64 = por %p62, %p63
      %p65 = scmp.ne.s32.totalorder %s56, %s57
      %p66 = scmp.eq.s32.totalorder %s25, 0
      %p67 = por %p65, %p66
      %p68 = scmp.ne.s32.totalorder %s56, %s57
      %p69 = scmp.eq.s32.totalorder %s26, 3
      %p70 = por %p68, %p69
      %p72 = scmp.ne.s32.totalorder %s57, %s71
      %p73 = scmp.eq.s32.totalorder %s26, 0
      %p74 = por %p72, %p73
      %s76 = sadd.s32 %s75, 1
      %p79 = scmp.eq.s32.totalorder %s20, 3
      %p80 = scmp.ne.s32.totalorder %s75, %s77
      %p81 = scmp.eq.s32.totalorder %s20, 0
      %p82 = por %p80, %p81
      %p83 = scmp.ne.s32.totalorder %s75, %s77
      %p84 = scmp.eq.s32.totalorder %s25, 3
      %p85 = por %p83, %p84
      %p86 = scmp.ne.s32.totalorder %s77, %s78
      %p87 = scmp.eq.s32.totalorder %s25, 0
      %p88 = por %p86, %p87
      %p89 = scmp.ne.s32.totalorder %s77, %s78
      %p90 = scmp.eq.s32.totalorder %s26, 3
      %p91 = por %p89, %p90
      %p93 = scmp.ne.s32.totalorder %s78, %s92
      %p94 = scmp.eq.s32.totalorder %s26, 0
      %p95 = por %p93, %p94
      %s97 = sadd.s32 %s96, 1
      %p100 = scmp.eq.s32.totalorder %s20, 3
      %p101 = scmp.ne.s32.totalorder %s96, %s98
      %p102 = scmp.eq.s32.totalorder %s20, 0
      %p103 = por %p101, %p102
      %p104 = scmp.ne.s32.totalorder %s96, %s98
      %p105 = scmp.eq.s32.totalorder %s25, 3
      %p106 = por %p104, %p105
      %p107 = scmp.ne.s32.totalorder %s98, %s99
      %p108 = scmp.eq.s32.totalorder %s25, 0
      %p109 = por %p107, %p108
      %p110 = scmp.ne.s32.totalorder %s98, %s99
      %p111 = scmp.eq.s32.totalorder %s26, 3
      %p112 = por %p110, %p111
      %p114 = scmp.ne.s32.totalorder %s99, %s113
      %p115 = scmp.eq.s32.totalorder %s26, 0
      %p116 = por %p114, %p115
      %s118 = sadd.s32 %s117, 1
      %p121 = scmp.eq.s32.totalorder %s20, 3
      %p122 = scmp.ne.s32.totalorder %s117, %s119
      %p123 = scmp.eq.s32.totalorder %s20, 0
      %p124 = por %p122, %p123
      %p125 = scmp.ne.s32.totalorder %s117, %s119
      %p126 = scmp.eq.s32.totalorder %s25, 3
      %p127 = por %p125, %p126
      %p128 = scmp.ne.s32.totalorder %s119, %s120
      %p129 = scmp.eq.s32.totalorder %s25, 0
      %p130 = por %p128, %p129
      %p131 = scmp.ne.s32.totalorder %s119, %s120
      %p132 = scmp.eq.s32.totalorder %s26, 3
      %p133 = por %p131, %p132
      %p135 = scmp.ne.s32.totalorder %s120, %s134
      %p136 = scmp.eq.s32.totalorder %s26, 0
      %p137 = por %p135, %p136
      %s139 = sadd.s32 %s138, 1
      %p142 = scmp.eq.s32.totalorder %s20, 3
      %p143 = scmp.ne.s32.totalorder %s138, %s140
      %p144 = scmp.eq.s32.totalorder %s20, 0
      %p145 = por %p143, %p144
      %p146 = scmp.ne.s32.totalorder %s138, %s140
      %p147 = scmp.eq.s32.totalorder %s25, 3
      %p148 = por %p146, %p147
      %p149 = scmp.ne.s32.totalorder %s140, %s141
      %p150 = scmp.eq.s32.totalorder %s25, 0
      %p151 = por %p149, %p150
      %p152 = scmp.ne.s32.totalorder %s140, %s141
      %p153 = scmp.eq.s32.totalorder %s26, 3
      %p154 = por %p152, %p153
      %p156 = scmp.ne.s32.totalorder %s141, %s155
      %p157 = scmp.eq.s32.totalorder %s26, 0
      %p158 = por %p156, %p157
      %s160 = sadd.s32 %s159, 1
      %p163 = scmp.eq.s32.totalorder %s20, 3
      %p164 = scmp.ne.s32.totalorder %s159, %s161
      %p165 = scmp.eq.s32.totalorder %s20, 0
      %p166 = por %p164, %p165
      %p167 = scmp.ne.s32.totalorder %s159, %s161
      %p168 = scmp.eq.s32.totalorder %s25, 3
      %p169 = por %p167, %p168
      %p170 = scmp.ne.s32.totalorder %s161, %s162
      %p171 = scmp.eq.s32.totalorder %s25, 0
      %p172 = por %p170, %p171
      %p173 = scmp.ne.s32.totalorder %s161, %s162
      %p174 = scmp.eq.s32.totalorder %s26, 3
      %p175 = por %p173, %p174
      %p177 = scmp.ne.s32.totalorder %s162, %s176
      %p178 = scmp.eq.s32.totalorder %s26, 0
      %p179 = por %p177, %p178
      %s180 = ssub.s32 %s20, %s27
      %p181 = scmp.eq.s32.totalorder %s180, 0
      %s183 = sadd.s32 %s182, 1
      %s184 = scalar_select %p181, %s182, %s183
      %p187 = pneg %p181
      %p188 = scmp.eq.s32.totalorder %s20, 3
      %p189 = por %p187, %p188
      %p190 = scmp.ne.s32.totalorder %s182, %s185
      %p191 = scmp.eq.s32.totalorder %s20, 0
      %p192 = por %p190, %p191
      %p193 = scmp.ne.s32.totalorder %s182, %s185
      %p194 = scmp.eq.s32.totalorder %s25, 3
      %p195 = por %p193, %p194
      %p196 = scmp.ne.s32.totalorder %s185, %s186
      %p197 = scmp.eq.s32.totalorder %s25, 0
      %p198 = por %p196, %p197
      %p199 = scmp.ne.s32.totalorder %s185, %s186
      %p200 = scmp.eq.s32.totalorder %s26, 3
      %p201 = por %p199, %p200
      %p203 = scmp.ne.s32.totalorder %s186, %s202
      %p204 = scmp.eq.s32.totalorder %s26, 0
      %p205 = por %p203, %p204
      %p206 = scmp.le.s32.totalorder 1, %s20
      %p207 = scmp.lt.s32.totalorder %s20, 5
      %p208 = pnand %p206, %p207
      %p209 = pneg %p208
      // Predicated region
      $region9: #{tpu_custom_call.1} parent=5 // pred_check
        _
      $region10: #{tpu_custom_call.1} parent=5 // pred_check_branch
        %211 = sbr.rel (%p208) target = $region12
      $region11: #{tpu_custom_call.1} parent=5 // pred_region
        %s212 = ssub.s32 %s20, 1
        // Predicated region
        $region13: #{tpu_custom_call.1} parent=11 // pred_check
          %p213 = pneg %p67
        $region14: #{tpu_custom_call.1} parent=11 // pred_check_branch
          %215 = sbr.rel (%p213) target = $region16
        $region15: #{tpu_custom_call.1} parent=11 // pred_region
          _
        $region16: #{tpu_custom_call.1} parent=11 // pred_fallthru
          _
        // Predicated region
        $region17: #{tpu_custom_call.1} parent=11 // pred_check
          %p216 = pneg %p88
        $region18: #{tpu_custom_call.1} parent=11 // pred_check_branch
          %218 = sbr.rel (%p216) target = $region20
        $region19: #{tpu_custom_call.1} parent=11 // pred_region
          _
        $region20: #{tpu_custom_call.1} parent=11 // pred_fallthru
          _
        // Predicated region
        $region21: #{tpu_custom_call.1} parent=11 // pred_check
          %p219 = pneg %p109
        $region22: #{tpu_custom_call.1} parent=11 // pred_check_branch
          %221 = sbr.rel (%p219) target = $region24
        $region23: #{tpu_custom_call.1} parent=11 // pred_region
          %s223 = ssub.s32 6144, 6144
          %224 = vsyncadd [#allocation7], %s223
          %s225 = sshll.u32 [#allocation6], 4
          %s226 = int_to_ptr.vmem [resolvable:$true] %s225
          %231 = dma.hbm_to_vmem [thread:$0]  %s3, 6144, %s226, [#allocation7], 128, 128, 8
        $region24: #{tpu_custom_call.1} parent=11 // pred_fallthru
          _
        // Predicated region
        $region25: #{tpu_custom_call.1} parent=11 // pred_check
          %p232 = pneg %p130
        $region26: #{tpu_custom_call.1} parent=11 // pred_check_branch
          %234 = sbr.rel (%p232) target = $region28
        $region27: #{tpu_custom_call.1} parent=11 // pred_region
          _
        $region28: #{tpu_custom_call.1} parent=11 // pred_fallthru
          _
        // Predicated region
        $region29: #{tpu_custom_call.1} parent=11 // pred_check
          %p235 = pneg %p151
        $region30: #{tpu_custom_call.1} parent=11 // pred_check_branch
          %237 = sbr.rel (%p235) target = $region32
        $region31: #{tpu_custom_call.1} parent=11 // pred_region
          _
        $region32: #{tpu_custom_call.1} parent=11 // pred_fallthru
          _
        // Predicated region
        $region33: #{tpu_custom_call.1} parent=11 // pred_check
          %p238 = pneg %p172
        $region34: #{tpu_custom_call.1} parent=11 // pred_check_branch
          %240 = sbr.rel (%p238) target = $region36
        $region35: #{tpu_custom_call.1} parent=11 // pred_region
          %s242 = ssub.s32 6144, 6144
          %243 = vsyncadd [#allocation7], %s242
          %s244 = sshll.u32 [#allocation8], 4
          %s245 = int_to_ptr.vmem [resolvable:$true] %s244
          %250 = dma.hbm_to_vmem [thread:$0]  %s6, 6144, %s245, [#allocation7], 128, 128, 8
        $region36: #{tpu_custom_call.1} parent=11 // pred_fallthru
          _
      $region12: #{tpu_custom_call.1} parent=5 // pred_fallthru
        _
      %p251 = scmp.lt.s32.totalorder %s20, 4
      // Predicated region
      $region37: #{tpu_custom_call.1} parent=5 // pred_check
        %p252 = pneg %p251
      $region38: #{tpu_custom_call.1} parent=5 // pred_check_branch
        %254 = sbr.rel (%p252) target = $region40
      $region39: #{tpu_custom_call.1} parent=5 // pred_region
        // Predicated region
        $region41: #{tpu_custom_call.1} parent=39 // pred_check
          %p255 = pneg %p40
        $region42: #{tpu_custom_call.1} parent=39 // pred_check_branch
          %257 = sbr.rel (%p255) target = $region44
        $region43: #{tpu_custom_call.1} parent=39 // pred_region
          %s258 = sand.u32 %s30, 1
          %s259 = scalar_lea.sflag [#allocation4], %s258
          %s260 = sand.u32 %s30, 1
          %s261 = smul.addr %s260, 16
          %s262 = scalar_lea.vmem [#allocation3], %s261
          %s264 = ssub.s32 256, 256
          %265 = vsyncadd %s259, %s264
          %s266 = smul.addr %s20, 2
          %s267 = smul.addr %s266, 128
          %s268 = scalar_lea.hbm %s0, %s267
          %s269 = sshll.u32 %s262, 4
          %s270 = int_to_ptr.vmem [resolvable:$true] %s269
          %275 = dma.hbm_to_vmem [thread:$0]  %s268, 256, %s270, %s259, 128, 128, 8
        $region44: #{tpu_custom_call.1} parent=39 // pred_fallthru
          _
      $region40: #{tpu_custom_call.1} parent=5 // pred_fallthru
        _
      %p276 = scmp.le.s32.totalorder 1, %s20
      %p277 = scmp.lt.s32.totalorder %s20, 5
      %p278 = pnand %p276, %p277
      %p279 = pneg %p278
      // Predicated region
      $region45: #{tpu_custom_call.1} parent=5 // pred_check
        _
      $region46: #{tpu_custom_call.1} parent=5 // pred_check_branch
        %281 = sbr.rel (%p278) target = $region48
      $region47: #{tpu_custom_call.1} parent=5 // pred_region
        %s282 = ssub.s32 %s20, 1
        %s283 = sand.u32 %s33, 1
        %s284 = scalar_lea.sflag [#allocation4], %s283
        %s285 = sand.u32 %s33, 1
        %s286 = smul.addr %s285, 16
        %s287 = scalar_lea.vmem [#allocation3], %s286
        // Predicated region
        $region49: #{tpu_custom_call.1} parent=47 // pred_check
          %p288 = pneg %p46
        $region50: #{tpu_custom_call.1} parent=47 // pred_check_branch
          %290 = sbr.rel (%p288) target = $region52
        $region51: #{tpu_custom_call.1} parent=47 // pred_region
          %291 = dma.done %s284, 256
        $region52: #{tpu_custom_call.1} parent=47 // pred_fallthru
          _
        // Predicated region
        $region53: #{tpu_custom_call.1} parent=47 // pred_check
          %p292 = pneg %p109
        $region54: #{tpu_custom_call.1} parent=47 // pred_check_branch
          %294 = sbr.rel (%p292) target = $region56
        $region55: #{tpu_custom_call.1} parent=47 // pred_region
          %295 = dma.done [#allocation7], 6144
        $region56: #{tpu_custom_call.1} parent=47 // pred_fallthru
          _
        // Predicated region
        $region57: #{tpu_custom_call.1} parent=47 // pred_check
          %p296 = pneg %p172
        $region58: #{tpu_custom_call.1} parent=47 // pred_check_branch
          %298 = sbr.rel (%p296) target = $region60
        $region59: #{tpu_custom_call.1} parent=47 // pred_region
          %299 = dma.done [#allocation7], 6144
        $region60: #{tpu_custom_call.1} parent=47 // pred_fallthru
          _
        %s300 = sand.u32 %s33, 1
        %s301 = scalar_lea.sflag [#allocation4], %s300
        %s302 = sand.u32 %s33, 1
        %s303 = smul.addr %s302, 16
        %s304 = scalar_lea.vmem [#allocation3], %s303
        %p305 = pneg %p46
        %p306 = pneg %p43
        %p307 = pneg %p67
        %p308 = pneg %p64
        %p309 = pneg %p88
        %p310 = pneg %p85
        %p311 = pneg %p109
        %p312 = pneg %p106
        %p313 = pneg %p130
        %p314 = pneg %p127
        %p315 = pneg %p151
        %p316 = pneg %p148
        %p317 = pneg %p172
        %p318 = pneg %p169
        %p319 = pneg %p198
        %p320 = pneg %p195
        %s321 = sand.u32 %s185, 1
        %s322 = scalar_lea.sflag [#allocation5], %s321
        %s323 = sand.u32 %s185, 1
        %s324 = smul.addr %s323, 16
        %s325 = scalar_lea.vmem [#allocation9], %s324
        %326 = vst [vmem:[#allocation2] sm:$0x1] 0.0
        %327 = vst [vmem:[#allocation2 + $0x11] sm:$0x1] 0.0
        %v328 = vld [vmem:[%s287] sm:$0xff]
        %v329 = vld [vmem:[%s287 + $0x8] sm:$0xff]
        %v330 = vld [vmem:[%s1] sm:$0x1]
        %v332 = vlaneseq
        %v333 = vshrl.u32 %v332, 7
        %v334 = vsub.s32 0, %v333
        %v335 = vrot.slane %v330, %v334
        %v337 = vmul.f32 %v328, %v335
        %v338 = vmul.f32 %v329, %v335
        %v339 = vld [vmem:[%s2] sm:$0x1]
        %v341 = vlaneseq
        %v342 = vshrl.u32 %v341, 7
        %v343 = vsub.s32 0, %v342
        %v344 = vrot.slane %v339, %v343
        %v346 = vadd.f32 %v337, %v344
        %v347 = vadd.f32 %v338, %v344
        %v348 = vmax.f32 %v346, 0.0
        %v349 = vmax.f32 %v347, 0.0
        %350 = vst [vmem:[%s325] sm:$0xff] %v348
        %351 = vst [vmem:[%s325 + $0x8] sm:$0xff] %v349
        %352 = vst [vmem:[#allocation2 + $0x1] sm:$0xff] %v348
        %353 = vst [vmem:[#allocation2 + $0x9] sm:$0xff] %v349
        %v354 = vld [vmem:[#allocation2] sm:$0xff]
        %v355 = vld [vmem:[#allocation2 + $0x8] sm:$0xff]
        %v356 = vld [vmem:[#allocation6] sm:$0xff]
        %v357 = vld [vmem:[#allocation6 + $0x8] sm:$0xff]
        %v358 = vld [vmem:[#allocation6 + $0x10] sm:$0xff]
        %v359 = vld [vmem:[#allocation6 + $0x18] sm:$0xff]
        %v360 = vld [vmem:[#allocation6 + $0x20] sm:$0xff]
        %v361 = vld [vmem:[#allocation6 + $0x28] sm:$0xff]
        %v362 = vld [vmem:[#allocation6 + $0x30] sm:$0xff]
        %v363 = vld [vmem:[#allocation6 + $0x38] sm:$0xff]
        %v364 = vld [vmem:[#allocation6 + $0x40] sm:$0xff]
        %v365 = vld [vmem:[#allocation6 + $0x48] sm:$0xff]
        %v366 = vld [vmem:[#allocation6 + $0x50] sm:$0xff]
        %v367 = vld [vmem:[#allocation6 + $0x58] sm:$0xff]
        %v368 = vld [vmem:[#allocation6 + $0x60] sm:$0xff]
        %v369 = vld [vmem:[#allocation6 + $0x68] sm:$0xff]
        %v370 = vld [vmem:[#allocation6 + $0x70] sm:$0xff]
        %v371 = vld [vmem:[#allocation6 + $0x78] sm:$0xff]
        %v372 = vld [vmem:[#allocation2 + $0x1] sm:$0xff]
        %v373 = vld [vmem:[#allocation2 + $0x9] sm:$0xff]
        %s374 = scalar_lea.vmem [#allocation6], 128
        %v375 = vld [vmem:[%s374] sm:$0xff]
        %v376 = vld [vmem:[%s374 + $0x8] sm:$0xff]
        %v377 = vld [vmem:[%s374 + $0x10] sm:$0xff]
        %v378 = vld [vmem:[%s374 + $0x18] sm:$0xff]
        %v379 = vld [vmem:[%s374 + $0x20] sm:$0xff]
        %v380 = vld [vmem:[%s374 + $0x28] sm:$0xff]
        %v381 = vld [vmem:[%s374 + $0x30] sm:$0xff]
        %v382 = vld [vmem:[%s374 + $0x38] sm:$0xff]
        %v383 = vld [vmem:[%s374 + $0x40] sm:$0xff]
        %v384 = vld [vmem:[%s374 + $0x48] sm:$0xff]
        %v385 = vld [vmem:[%s374 + $0x50] sm:$0xff]
        %v386 = vld [vmem:[%s374 + $0x58] sm:$0xff]
        %v387 = vld [vmem:[%s374 + $0x60] sm:$0xff]
        %v388 = vld [vmem:[%s374 + $0x68] sm:$0xff]
        %v389 = vld [vmem:[%s374 + $0x70] sm:$0xff]
        %v390 = vld [vmem:[%s374 + $0x78] sm:$0xff]
        %391 = vmatprep.subr.mxu0 0.0
        %392 = vmatpush1.msra.mxu0 %v375
        %393 = vmatprep.subr.mxu0 0.0
        %394 = vmatpush1.msra.mxu0 %v376
        %395 = vmatprep.subr.mxu0 0.0
        %396 = vmatpush1.msra.mxu0 %v377
        %397 = vmatprep.subr.mxu0 0.0
        %398 = vmatpush1.msra.mxu0 %v378
        %399 = vmatprep.subr.mxu0 0.0
        %400 = vmatpush1.msra.mxu0 %v379
        %401 = vmatprep.subr.mxu0 0.0
        %402 = vmatpush1.msra.mxu0 %v380
        %403 = vmatprep.subr.mxu0 0.0
        %404 = vmatpush1.msra.mxu0 %v381
        %405 = vmatprep.subr.mxu0 0.0
        %406 = vmatpush1.msra.mxu0 %v382
        %407 = vmatprep.subr.mxu0 0.0
        %408 = vmatpush1.msra.mxu0 %v383
        %409 = vmatprep.subr.mxu0 0.0
        %410 = vmatpush1.msra.mxu0 %v384
        %411 = vmatprep.subr.mxu0 0.0
        %412 = vmatpush1.msra.mxu0 %v385
        %413 = vmatprep.subr.mxu0 0.0
        %414 = vmatpush1.msra.mxu0 %v386
        %415 = vmatprep.subr.mxu0 0.0
        %416 = vmatpush1.msra.mxu0 %v387
        %417 = vmatprep.subr.mxu0 0.0
        %418 = vmatpush1.msra.mxu0 %v388
        %419 = vmatprep.subr.mxu0 0.0
        %420 = vmatpush1.msra.mxu0 %v389
        %421 = vmatprep.subr.mxu0 0.0
        %422 = vmatpush1.msra.mxu0 %v390
        %423 = vmatprep.subr.mxu0 0.0
        %424 = vmatpush1.msra.mxu0 0.0
        %425 = vmatprep.subr.mxu0 0.0
        %426 = vmatpush1.msra.mxu0 0.0
        %427 = vmatprep.subr.mxu0 0.0
        %428 = vmatpush1.msra.mxu0 0.0
        %429 = vmatprep.subr.mxu0 0.0
        %430 = vmatpush1.msra.mxu0 0.0
        %431 = vmatprep.subr.mxu0 0.0
        %432 = vmatpush1.msra.mxu0 0.0
        %433 = vmatprep.subr.mxu0 0.0
        %434 = vmatpush1.msra.mxu0 0.0
        %435 = vmatprep.subr.mxu0 0.0
        %436 = vmatpush1.msra.mxu0 0.0
        %437 = vmatprep.subr.mxu0 0.0
        %438 = vmatpush1.msra.mxu0 0.0
        %439 = vmatprep.subr.mxu0 0.0
        %440 = vmatpush1.msra.mxu0 0.0
        %441 = vmatprep.subr.mxu0 0.0
        %442 = vmatpush1.msra.mxu0 0.0
        %443 = vmatprep.subr.mxu0 0.0
        %444 = vmatpush1.msra.mxu0 0.0
        %445 = vmatprep.subr.mxu0 0.0
        %446 = vmatpush1.msra.mxu0 0.0
        %447 = vmatprep.subr.mxu0 0.0
        %448 = vmatpush1.msra.mxu0 0.0
        %449 = vmatprep.subr.mxu0 0.0
        %450 = vmatpush1.msra.mxu0 0.0
        %451 = vmatprep.subr.mxu0 0.0
        %452 = vmatpush1.msra.mxu0 0.0
        %453 = vmatprep.subr.mxu0 0.0
        %454 = vmatpush1.msra.mxu0 0.0
        %455 = vmatprep.mubr.f32.mxu0 0.0
        %456 = vmatmul.mubr.f32.gmra.mrb[0].mxu0 %v372
        %v457 = vpop.f32.mrb[0].mxu0
        %v458 = vadd.f32 0.0, %v457
        %v459 = vpop.f32.mrb[0].mxu0
        %460 = vmatprep.mubr.f32.mxu0 0.0
        %461 = vmatmul.mubr.f32.gmra.mrb[0].mxu0 %v373
        %v462 = vpop.f32.mrb[0].mxu0
        %v463 = vadd.f32 0.0, %v462
        %v464 = vpop.f32.mrb[0].mxu0
        %465 = vdwg.mxu0
        %466 = vmatprep.subr.mxu0 0.0
        %467 = vmatpush1.msra.mxu0 %v356
        %468 = vmatprep.subr.mxu0 0.0
        %469 = vmatpush1.msra.mxu0 %v357
        %470 = vmatprep.subr.mxu0 0.0
        %471 = vmatpush1.msra.mxu0 %v358
        %472 = vmatprep.subr.mxu0 0.0
        %473 = vmatpush1.msra.mxu0 %v359
        %474 = vmatprep.subr.mxu0 0.0
        %475 = vmatpush1.msra.mxu0 %v360
        %476 = vmatprep.subr.mxu0 0.0
        %477 = vmatpush1.msra.mxu0 %v361
        %478 = vmatprep.subr.mxu0 0.0
        %479 = vmatpush1.msra.mxu0 %v362
        %480 = vmatprep.subr.mxu0 0.0
        %481 = vmatpush1.msra.mxu0 %v363
        %482 = vmatprep.subr.mxu0 0.0
        %483 = vmatpush1.msra.mxu0 %v364
        %484 = vmatprep.subr.mxu0 0.0
        %485 = vmatpush1.msra.mxu0 %v365
        %486 = vmatprep.subr.mxu0 0.0
        %487 = vmatpush1.msra.mxu0 %v366
        %488 = vmatprep.subr.mxu0 0.0
        %489 = vmatpush1.msra.mxu0 %v367
        %490 = vmatprep.subr.mxu0 0.0
        %491 = vmatpush1.msra.mxu0 %v368
        %492 = vmatprep.subr.mxu0 0.0
        %493 = vmatpush1.msra.mxu0 %v369
        %494 = vmatprep.subr.mxu0 0.0
        %495 = vmatpush1.msra.mxu0 %v370
        %496 = vmatprep.subr.mxu0 0.0
        %497 = vmatpush1.msra.mxu0 %v371
        %498 = vmatprep.subr.mxu0 0.0
        %499 = vmatpush1.msra.mxu0 0.0
        %500 = vmatprep.subr.mxu0 0.0
        %501 = vmatpush1.msra.mxu0 0.0
        %502 = vmatprep.subr.mxu0 0.0
        %503 = vmatpush1.msra.mxu0 0.0
        %504 = vmatprep.subr.mxu0 0.0
        %505 = vmatpush1.msra.mxu0 0.0
        %506 = vmatprep.subr.mxu0 0.0
        %507 = vmatpush1.msra.mxu0 0.0
        %508 = vmatprep.subr.mxu0 0.0
        %509 = vmatpush1.msra.mxu0 0.0
        %510 = vmatprep.subr.mxu0 0.0
        %511 = vmatpush1.msra.mxu0 0.0
        %512 = vmatprep.subr.mxu0 0.0
        %513 = vmatpush1.msra.mxu0 0.0
        %514 = vmatprep.subr.mxu0 0.0
        %515 = vmatpush1.msra.mxu0 0.0
        %516 = vmatprep.subr.mxu0 0.0
        %517 = vmatpush1.msra.mxu0 0.0
        %518 = vmatprep.subr.mxu0 0.0
        %519 = vmatpush1.msra.mxu0 0.0
        %520 = vmatprep.subr.mxu0 0.0
        %521 = vmatpush1.msra.mxu0 0.0
        %522 = vmatprep.subr.mxu0 0.0
        %523 = vmatpush1.msra.mxu0 0.0
        %524 = vmatprep.subr.mxu0 0.0
        %525 = vmatpush1.msra.mxu0 0.0
        %526 = vmatprep.subr.mxu0 0.0
        %527 = vmatpush1.msra.mxu0 0.0
        %528 = vmatprep.subr.mxu0 0.0
        %529 = vmatpush1.msra.mxu0 0.0
        %530 = vmatprep.mubr.f32.mxu0 0.0
        %531 = vmatmul.mubr.f32.gmra.mrb[0].mxu0 %v354
        %v532 = vpop.f32.mrb[0].mxu0
        %v533 = vadd.f32 %v458, %v532
        %v534 = vpop.f32.mrb[0].mxu0
        %535 = vmatprep.mubr.f32.mxu0 0.0
        %536 = vmatmul.mubr.f32.gmra.mrb[0].mxu0 %v355
        %v537 = vpop.f32.mrb[0].mxu0
        %v538 = vadd.f32 %v463, %v537
        %v539 = vpop.f32.mrb[0].mxu0
        %540 = vdwg.mxu0
        %v541 = vld [vmem:[#allocation2 + $0x2] sm:$0xff]
        %v542 = vld [vmem:[#allocation2 + $0xa] sm:$0xff]
        %s543 = scalar_lea.vmem [#allocation6], 256
        %v544 = vld [vmem:[%s543] sm:$0xff]
        %v545 = vld [vmem:[%s543 + $0x8] sm:$0xff]
        %v546 = vld [vmem:[%s543 + $0x10] sm:$0xff]
        %v547 = vld [vmem:[%s543 + $0x18] sm:$0xff]
        %v548 = vld [vmem:[%s543 + $0x20] sm:$0xff]
        %v549 = vld [vmem:[%s543 + $0x28] sm:$0xff]
        %v550 = vld [vmem:[%s543 + $0x30] sm:$0xff]
        %v551 = vld [vmem:[%s543 + $0x38] sm:$0xff]
        %v552 = vld [vmem:[%s543 + $0x40] sm:$0xff]
        %v553 = vld [vmem:[%s543 + $0x48] sm:$0xff]
        %v554 = vld [vmem:[%s543 + $0x50] sm:$0xff]
        %v555 = vld [vmem:[%s543 + $0x58] sm:$0xff]
        %v556 = vld [vmem:[%s543 + $0x60] sm:$0xff]
        %v557 = vld [vmem:[%s543 + $0x68] sm:$0xff]
        %v558 = vld [vmem:[%s543 + $0x70] sm:$0xff]
        %v559 = vld [vmem:[%s543 + $0x78] sm:$0xff]
        %560 = vmatprep.subr.mxu0 0.0
        %561 = vmatpush1.msra.mxu0 %v544
        %562 = vmatprep.subr.mxu0 0.0
        %563 = vmatpush1.msra.mxu0 %v545
        %564 = vmatprep.subr.mxu0 0.0
        %565 = vmatpush1.msra.mxu0 %v546
        %566 = vmatprep.subr.mxu0 0.0
        %567 = vmatpush1.msra.mxu0 %v547
        %568 = vmatprep.subr.mxu0 0.0
        %569 = vmatpush1.msra.mxu0 %v548
        %570 = vmatprep.subr.mxu0 0.0
        %571 = vmatpush1.msra.mxu0 %v549
        %572 = vmatprep.subr.mxu0 0.0
        %573 = vmatpush1.msra.mxu0 %v550
        %574 = vmatprep.subr.mxu0 0.0
        %575 = vmatpush1.msra.mxu0 %v551
        %576 = vmatprep.subr.mxu0 0.0
        %577 = vmatpush1.msra.mxu0 %v552
        %578 = vmatprep.subr.mxu0 0.0
        %579 = vmatpush1.msra.mxu0 %v553
        %580 = vmatprep.subr.mxu0 0.0
        %581 = vmatpush1.msra.mxu0 %v554
        %582 = vmatprep.subr.mxu0 0.0
        %583 = vmatpush1.msra.mxu0 %v555
        %584 = vmatprep.subr.mxu0 0.0
        %585 = vmatpush1.msra.mxu0 %v556
        %586 = vmatprep.subr.mxu0 0.0
        %587 = vmatpush1.msra.mxu0 %v557
        %588 = vmatprep.subr.mxu0 0.0
        %589 = vmatpush1.msra.mxu0 %v558
        %590 = vmatprep.subr.mxu0 0.0
        %591 = vmatpush1.msra.mxu0 %v559
        %592 = vmatprep.subr.mxu0 0.0
        %593 = vmatpush1.msra.mxu0 0.0
        %594 = vmatprep.subr.mxu0 0.0
        %595 = vmatpush1.msra.mxu0 0.0
        %596 = vmatprep.subr.mxu0 0.0
        %597 = vmatpush1.msra.mxu0 0.0
        %598 = vmatprep.subr.mxu0 0.0
        %599 = vmatpush1.msra.mxu0 0.0
        %600 = vmatprep.subr.mxu0 0.0
        %601 = vmatpush1.msra.mxu0 0.0
        %602 = vmatprep.subr.mxu0 0.0
        %603 = vmatpush1.msra.mxu0 0.0
        %604 = vmatprep.subr.mxu0 0.0
        %605 = vmatpush1.msra.mxu0 0.0
        %606 = vmatprep.subr.mxu0 0.0
        %607 = vmatpush1.msra.mxu0 0.0
        %608 = vmatprep.subr.mxu0 0.0
        %609 = vmatpush1.msra.mxu0 0.0
        %610 = vmatprep.subr.mxu0 0.0
        %611 = vmatpush1.msra.mxu0 0.0
        %612 = vmatprep.subr.mxu0 0.0
        %613 = vmatpush1.msra.mxu0 0.0
        %614 = vmatprep.subr.mxu0 0.0
        %615 = vmatpush1.msra.mxu0 0.0
        %616 = vmatprep.subr.mxu0 0.0
        %617 = vmatpush1.msra.mxu0 0.0
        %618 = vmatprep.subr.mxu0 0.0
        %619 = vmatpush1.msra.mxu0 0.0
        %620 = vmatprep.subr.mxu0 0.0
        %621 = vmatpush1.msra.mxu0 0.0
        %622 = vmatprep.subr.mxu0 0.0
        %623 = vmatpush1.msra.mxu0 0.0
        %624 = vmatprep.mubr.f32.mxu0 0.0
        %625 = vmatmul.mubr.f32.gmra.mrb[0].mxu0 %v541
        %v626 = vpop.f32.mrb[0].mxu0
        %v627 = vadd.f32 0.0, %v626
        %v628 = vpop.f32.mrb[0].mxu0
        %629 = vmatprep.mubr.f32.mxu0 0.0
        %630 = vmatmul.mubr.f32.gmra.mrb[0].mxu0 %v542
        %v631 = vpop.f32.mrb[0].mxu0
        %v632 = vadd.f32 0.0, %v631
        %v633 = vpop.f32.mrb[0].mxu0
        %634 = vdwg.mxu0
        %v635 = vadd.f32 %v533, %v627
        %v636 = vadd.f32 %v538, %v632
        %v637 = vld [vmem:[%s4] sm:$0x1]
        %v639 = vlaneseq
        %v640 = vshrl.u32 %v639, 7
        %v641 = vsub.s32 0, %v640
        %v642 = vrot.slane %v637, %v641
        %v644 = vmul.f32 %v635, %v642
        %v645 = vmul.f32 %v636, %v642
        %v646 = vld [vmem:[%s5] sm:$0x1]
        %v648 = vlaneseq
        %v649 = vshrl.u32 %v648, 7
        %v650 = vsub.s32 0, %v649
        %v651 = vrot.slane %v646, %v650
        %v653 = vadd.f32 %v644, %v651
        %v654 = vadd.f32 %v645, %v651
        %v655 = vmax.f32 %v653, 0.0
        %v656 = vmax.f32 %v654, 0.0
        %657 = vst [vmem:[#allocation2 + $0x1] sm:$0xff] %v655
        %658 = vst [vmem:[#allocation2 + $0x9] sm:$0xff] %v656
        %v659 = vld [vmem:[#allocation2] sm:$0xff]
        %v660 = vld [vmem:[#allocation2 + $0x8] sm:$0xff]
        %v661 = vld [vmem:[#allocation8] sm:$0xff]
        %v662 = vld [vmem:[#allocation8 + $0x8] sm:$0xff]
        %v663 = vld [vmem:[#allocation8 + $0x10] sm:$0xff]
        %v664 = vld [vmem:[#allocation8 + $0x18] sm:$0xff]
        %v665 = vld [vmem:[#allocation8 + $0x20] sm:$0xff]
        %v666 = vld [vmem:[#allocation8 + $0x28] sm:$0xff]
        %v667 = vld [vmem:[#allocation8 + $0x30] sm:$0xff]
        %v668 = vld [vmem:[#allocation8 + $0x38] sm:$0xff]
        %v669 = vld [vmem:[#allocation8 + $0x40] sm:$0xff]
        %v670 = vld [vmem:[#allocation8 + $0x48] sm:$0xff]
        %v671 = vld [vmem:[#allocation8 + $0x50] sm:$0xff]
        %v672 = vld [vmem:[#allocation8 + $0x58] sm:$0xff]
        %v673 = vld [vmem:[#allocation8 + $0x60] sm:$0xff]
        %v674 = vld [vmem:[#allocation8 + $0x68] sm:$0xff]
        %v675 = vld [vmem:[#allocation8 + $0x70] sm:$0xff]
        %v676 = vld [vmem:[#allocation8 + $0x78] sm:$0xff]
        %v677 = vld [vmem:[#allocation2 + $0x1] sm:$0xff]
        %v678 = vld [vmem:[#allocation2 + $0x9] sm:$0xff]
        %s679 = scalar_lea.vmem [#allocation8], 128
        %v680 = vld [vmem:[%s679] sm:$0xff]
        %v681 = vld [vmem:[%s679 + $0x8] sm:$0xff]
        %v682 = vld [vmem:[%s679 + $0x10] sm:$0xff]
        %v683 = vld [vmem:[%s679 + $0x18] sm:$0xff]
        %v684 = vld [vmem:[%s679 + $0x20] sm:$0xff]
        %v685 = vld [vmem:[%s679 + $0x28] sm:$0xff]
        %v686 = vld [vmem:[%s679 + $0x30] sm:$0xff]
        %v687 = vld [vmem:[%s679 + $0x38] sm:$0xff]
        %v688 = vld [vmem:[%s679 + $0x40] sm:$0xff]
        %v689 = vld [vmem:[%s679 + $0x48] sm:$0xff]
        %v690 = vld [vmem:[%s679 + $0x50] sm:$0xff]
        %v691 = vld [vmem:[%s679 + $0x58] sm:$0xff]
        %v692 = vld [vmem:[%s679 + $0x60] sm:$0xff]
        %v693 = vld [vmem:[%s679 + $0x68] sm:$0xff]
        %v694 = vld [vmem:[%s679 + $0x70] sm:$0xff]
        %v695 = vld [vmem:[%s679 + $0x78] sm:$0xff]
        %696 = vmatprep.subr.mxu0 0.0
        %697 = vmatpush1.msra.mxu0 %v680
        %698 = vmatprep.subr.mxu0 0.0
        %699 = vmatpush1.msra.mxu0 %v681
        %700 = vmatprep.subr.mxu0 0.0
        %701 = vmatpush1.msra.mxu0 %v682
        %702 = vmatprep.subr.mxu0 0.0
        %703 = vmatpush1.msra.mxu0 %v683
        %704 = vmatprep.subr.mxu0 0.0
        %705 = vmatpush1.msra.mxu0 %v684
        %706 = vmatprep.subr.mxu0 0.0
        %707 = vmatpush1.msra.mxu0 %v685
        %708 = vmatprep.subr.mxu0 0.0
        %709 = vmatpush1.msra.mxu0 %v686
        %710 = vmatprep.subr.mxu0 0.0
        %711 = vmatpush1.msra.mxu0 %v687
        %712 = vmatprep.subr.mxu0 0.0
        %713 = vmatpush1.msra.mxu0 %v688
        %714 = vmatprep.subr.mxu0 0.0
        %715 = vmatpush1.msra.mxu0 %v689
        %716 = vmatprep.subr.mxu0 0.0
        %717 = vmatpush1.msra.mxu0 %v690
        %718 = vmatprep.subr.mxu0 0.0
        %719 = vmatpush1.msra.mxu0 %v691
        %720 = vmatprep.subr.mxu0 0.0
        %721 = vmatpush1.msra.mxu0 %v692
        %722 = vmatprep.subr.mxu0 0.0
        %723 = vmatpush1.msra.mxu0 %v693
        %724 = vmatprep.subr.mxu0 0.0
        %725 = vmatpush1.msra.mxu0 %v694
        %726 = vmatprep.subr.mxu0 0.0
        %727 = vmatpush1.msra.mxu0 %v695
        %728 = vmatprep.subr.mxu0 0.0
        %729 = vmatpush1.msra.mxu0 0.0
        %730 = vmatprep.subr.mxu0 0.0
        %731 = vmatpush1.msra.mxu0 0.0
        %732 = vmatprep.subr.mxu0 0.0
        %733 = vmatpush1.msra.mxu0 0.0
        %734 = vmatprep.subr.mxu0 0.0
        %735 = vmatpush1.msra.mxu0 0.0
        %736 = vmatprep.subr.mxu0 0.0
        %737 = vmatpush1.msra.mxu0 0.0
        %738 = vmatprep.subr.mxu0 0.0
        %739 = vmatpush1.msra.mxu0 0.0
        %740 = vmatprep.subr.mxu0 0.0
        %741 = vmatpush1.msra.mxu0 0.0
        %742 = vmatprep.subr.mxu0 0.0
        %743 = vmatpush1.msra.mxu0 0.0
        %744 = vmatprep.subr.mxu0 0.0
        %745 = vmatpush1.msra.mxu0 0.0
        %746 = vmatprep.subr.mxu0 0.0
        %747 = vmatpush1.msra.mxu0 0.0
        %748 = vmatprep.subr.mxu0 0.0
        %749 = vmatpush1.msra.mxu0 0.0
        %750 = vmatprep.subr.mxu0 0.0
        %751 = vmatpush1.msra.mxu0 0.0
        %752 = vmatprep.subr.mxu0 0.0
        %753 = vmatpush1.msra.mxu0 0.0
        %754 = vmatprep.subr.mxu0 0.0
        %755 = vmatpush1.msra.mxu0 0.0
        %756 = vmatprep.subr.mxu0 0.0
        %757 = vmatpush1.msra.mxu0 0.0
        %758 = vmatprep.subr.mxu0 0.0
        %759 = vmatpush1.msra.mxu0 0.0
        %760 = vmatprep.mubr.f32.mxu0 0.0
        %761 = vmatmul.mubr.f32.gmra.mrb[0].mxu0 %v677
        %v762 = vpop.f32.mrb[0].mxu0
        %v763 = vadd.f32 0.0, %v762
        %v764 = vpop.f32.mrb[0].mxu0
        %765 = vmatprep.mubr.f32.mxu0 0.0
        %766 = vmatmul.mubr.f32.gmra.mrb[0].mxu0 %v678
        %v767 = vpop.f32.mrb[0].mxu0
        %v768 = vadd.f32 0.0, %v767
        %v769 = vpop.f32.mrb[0].mxu0
        %770 = vdwg.mxu0
        %771 = vmatprep.subr.mxu0 0.0
        %772 = vmatpush1.msra.mxu0 %v661
        %773 = vmatprep.subr.mxu0 0.0
        %774 = vmatpush1.msra.mxu0 %v662
        %775 = vmatprep.subr.mxu0 0.0
        %776 = vmatpush1.msra.mxu0 %v663
        %777 = vmatprep.subr.mxu0 0.0
        %778 = vmatpush1.msra.mxu0 %v664
        %779 = vmatprep.subr.mxu0 0.0
        %780 = vmatpush1.msra.mxu0 %v665
        %781 = vmatprep.subr.mxu0 0.0
        %782 = vmatpush1.msra.mxu0 %v666
        %783 = vmatprep.subr.mxu0 0.0
        %784 = vmatpush1.msra.mxu0 %v667
        %785 = vmatprep.subr.mxu0 0.0
        %786 = vmatpush1.msra.mxu0 %v668
        %787 = vmatprep.subr.mxu0 0.0
        %788 = vmatpush1.msra.mxu0 %v669
        %789 = vmatprep.subr.mxu0 0.0
        %790 = vmatpush1.msra.mxu0 %v670
        %791 = vmatprep.subr.mxu0 0.0
        %792 = vmatpush1.msra.mxu0 %v671
        %793 = vmatprep.subr.mxu0 0.0
        %794 = vmatpush1.msra.mxu0 %v672
        %795 = vmatprep.subr.mxu0 0.0
        %796 = vmatpush1.msra.mxu0 %v673
        %797 = vmatprep.subr.mxu0 0.0
        %798 = vmatpush1.msra.mxu0 %v674
        %799 = vmatprep.subr.mxu0 0.0
        %800 = vmatpush1.msra.mxu0 %v675
        %801 = vmatprep.subr.mxu0 0.0
        %802 = vmatpush1.msra.mxu0 %v676
        %803 = vmatprep.subr.mxu0 0.0
        %804 = vmatpush1.msra.mxu0 0.0
        %805 = vmatprep.subr.mxu0 0.0
        %806 = vmatpush1.msra.mxu0 0.0
        %807 = vmatprep.subr.mxu0 0.0
        %808 = vmatpush1.msra.mxu0 0.0
        %809 = vmatprep.subr.mxu0 0.0
        %810 = vmatpush1.msra.mxu0 0.0
        %811 = vmatprep.subr.mxu0 0.0
        %812 = vmatpush1.msra.mxu0 0.0
        %813 = vmatprep.subr.mxu0 0.0
        %814 = vmatpush1.msra.mxu0 0.0
        %815 = vmatprep.subr.mxu0 0.0
        %816 = vmatpush1.msra.mxu0 0.0
        %817 = vmatprep.subr.mxu0 0.0
        %818 = vmatpush1.msra.mxu0 0.0
        %819 = vmatprep.subr.mxu0 0.0
        %820 = vmatpush1.msra.mxu0 0.0
        %821 = vmatprep.subr.mxu0 0.0
        %822 = vmatpush1.msra.mxu0 0.0
        %823 = vmatprep.subr.mxu0 0.0
        %824 = vmatpush1.msra.mxu0 0.0
        %825 = vmatprep.subr.mxu0 0.0
        %826 = vmatpush1.msra.mxu0 0.0
        %827 = vmatprep.subr.mxu0 0.0
        %828 = vmatpush1.msra.mxu0 0.0
        %829 = vmatprep.subr.mxu0 0.0
        %830 = vmatpush1.msra.mxu0 0.0
        %831 = vmatprep.subr.mxu0 0.0
        %832 = vmatpush1.msra.mxu0 0.0
        %833 = vmatprep.subr.mxu0 0.0
        %834 = vmatpush1.msra.mxu0 0.0
        %835 = vmatprep.mubr.f32.mxu0 0.0
        %836 = vmatmul.mubr.f32.gmra.mrb[0].mxu0 %v659
        %v837 = vpop.f32.mrb[0].mxu0
        %v838 = vadd.f32 %v763, %v837
        %v839 = vpop.f32.mrb[0].mxu0
        %840 = vmatprep.mubr.f32.mxu0 0.0
        %841 = vmatmul.mubr.f32.gmra.mrb[0].mxu0 %v660
        %v842 = vpop.f32.mrb[0].mxu0
        %v843 = vadd.f32 %v768, %v842
        %v844 = vpop.f32.mrb[0].mxu0
        %845 = vdwg.mxu0
        %v846 = vld [vmem:[#allocation2 + $0x2] sm:$0xff]
        %v847 = vld [vmem:[#allocation2 + $0xa] sm:$0xff]
        %s848 = scalar_lea.vmem [#allocation8], 256
        %v849 = vld [vmem:[%s848] sm:$0xff]
        %v850 = vld [vmem:[%s848 + $0x8] sm:$0xff]
        %v851 = vld [vmem:[%s848 + $0x10] sm:$0xff]
        %v852 = vld [vmem:[%s848 + $0x18] sm:$0xff]
        %v853 = vld [vmem:[%s848 + $0x20] sm:$0xff]
        %v854 = vld [vmem:[%s848 + $0x28] sm:$0xff]
        %v855 = vld [vmem:[%s848 + $0x30] sm:$0xff]
        %v856 = vld [vmem:[%s848 + $0x38] sm:$0xff]
        %v857 = vld [vmem:[%s848 + $0x40] sm:$0xff]
        %v858 = vld [vmem:[%s848 + $0x48] sm:$0xff]
        %v859 = vld [vmem:[%s848 + $0x50] sm:$0xff]
        %v860 = vld [vmem:[%s848 + $0x58] sm:$0xff]
        %v861 = vld [vmem:[%s848 + $0x60] sm:$0xff]
        %v862 = vld [vmem:[%s848 + $0x68] sm:$0xff]
        %v863 = vld [vmem:[%s848 + $0x70] sm:$0xff]
        %v864 = vld [vmem:[%s848 + $0x78] sm:$0xff]
        %865 = vmatprep.subr.mxu0 0.0
        %866 = vmatpush1.msra.mxu0 %v849
        %867 = vmatprep.subr.mxu0 0.0
        %868 = vmatpush1.msra.mxu0 %v850
        %869 = vmatprep.subr.mxu0 0.0
        %870 = vmatpush1.msra.mxu0 %v851
        %871 = vmatprep.subr.mxu0 0.0
        %872 = vmatpush1.msra.mxu0 %v852
        %873 = vmatprep.subr.mxu0 0.0
        %874 = vmatpush1.msra.mxu0 %v853
        %875 = vmatprep.subr.mxu0 0.0
        %876 = vmatpush1.msra.mxu0 %v854
        %877 = vmatprep.subr.mxu0 0.0
        %878 = vmatpush1.msra.mxu0 %v855
        %879 = vmatprep.subr.mxu0 0.0
        %880 = vmatpush1.msra.mxu0 %v856
        %881 = vmatprep.subr.mxu0 0.0
        %882 = vmatpush1.msra.mxu0 %v857
        %883 = vmatprep.subr.mxu0 0.0
        %884 = vmatpush1.msra.mxu0 %v858
        %885 = vmatprep.subr.mxu0 0.0
        %886 = vmatpush1.msra.mxu0 %v859
        %887 = vmatprep.subr.mxu0 0.0
        %888 = vmatpush1.msra.mxu0 %v860
        %889 = vmatprep.subr.mxu0 0.0
        %890 = vmatpush1.msra.mxu0 %v861
        %891 = vmatprep.subr.mxu0 0.0
        %892 = vmatpush1.msra.mxu0 %v862
        %893 = vmatprep.subr.mxu0 0.0
        %894 = vmatpush1.msra.mxu0 %v863
        %895 = vmatprep.subr.mxu0 0.0
        %896 = vmatpush1.msra.mxu0 %v864
        %897 = vmatprep.subr.mxu0 0.0
        %898 = vmatpush1.msra.mxu0 0.0
        %899 = vmatprep.subr.mxu0 0.0
        %900 = vmatpush1.msra.mxu0 0.0
        %901 = vmatprep.subr.mxu0 0.0
        %902 = vmatpush1.msra.mxu0 0.0
        %903 = vmatprep.subr.mxu0 0.0
        %904 = vmatpush1.msra.mxu0 0.0
        %905 = vmatprep.subr.mxu0 0.0
        %906 = vmatpush1.msra.mxu0 0.0
        %907 = vmatprep.subr.mxu0 0.0
        %908 = vmatpush1.msra.mxu0 0.0
        %909 = vmatprep.subr.mxu0 0.0
        %910 = vmatpush1.msra.mxu0 0.0
        %911 = vmatprep.subr.mxu0 0.0
        %912 = vmatpush1.msra.mxu0 0.0
        %913 = vmatprep.subr.mxu0 0.0
        %914 = vmatpush1.msra.mxu0 0.0
        %915 = vmatprep.subr.mxu0 0.0
        %916 = vmatpush1.msra.mxu0 0.0
        %917 = vmatprep.subr.mxu0 0.0
        %918 = vmatpush1.msra.mxu0 0.0
        %919 = vmatprep.subr.mxu0 0.0
        %920 = vmatpush1.msra.mxu0 0.0
        %921 = vmatprep.subr.mxu0 0.0
        %922 = vmatpush1.msra.mxu0 0.0
        %923 = vmatprep.subr.mxu0 0.0
        %924 = vmatpush1.msra.mxu0 0.0
        %925 = vmatprep.subr.mxu0 0.0
        %926 = vmatpush1.msra.mxu0 0.0
        %927 = vmatprep.subr.mxu0 0.0
        %928 = vmatpush1.msra.mxu0 0.0
        %929 = vmatprep.mubr.f32.mxu0 0.0
        %930 = vmatmul.mubr.f32.gmra.mrb[0].mxu0 %v846
        %v931 = vpop.f32.mrb[0].mxu0
        %v932 = vadd.f32 0.0, %v931
        %v933 = vpop.f32.mrb[0].mxu0
        %934 = vmatprep.mubr.f32.mxu0 0.0
        %935 = vmatmul.mubr.f32.gmra.mrb[0].mxu0 %v847
        %v936 = vpop.f32.mrb[0].mxu0
        %v937 = vadd.f32 0.0, %v936
        %v938 = vpop.f32.mrb[0].mxu0
        %939 = vdwg.mxu0
        %v940 = vadd.f32 %v838, %v932
        %v941 = vadd.f32 %v843, %v937
        %v942 = vld [vmem:[%s325] sm:$0xff]
        %v943 = vld [vmem:[%s325 + $0x8] sm:$0xff]
        %v944 = vadd.f32 %v940, %v942
        %v945 = vadd.f32 %v941, %v943
        %946 = vst [vmem:[%s325] sm:$0xff] %v944
        %947 = vst [vmem:[%s325 + $0x8] sm:$0xff] %v945
        %s948 = sand.u32 %s185, 1
        %s949 = scalar_lea.sflag [#allocation5], %s948
        %s950 = sand.u32 %s185, 1
        %s951 = smul.addr %s950, 16
        %s952 = scalar_lea.vmem [#allocation9], %s951
        // Predicated region
        $region61: #{tpu_custom_call.1} parent=47 // pred_check
          %p953 = pneg %p195
        $region62: #{tpu_custom_call.1} parent=47 // pred_check_branch
          %955 = sbr.rel (%p953) target = $region64
        $region63: #{tpu_custom_call.1} parent=47 // pred_region
          %s957 = ssub.s32 256, 256
          %958 = vsyncadd %s949, %s957
          %s959 = smul.addr %s25, 2
          %s960 = smul.addr %s959, 128
          %s961 = scalar_lea.hbm %s7, %s960
          %s962 = sshll.u32 %s952, 4
          %s963 = int_to_ptr.vmem [resolvable:$true] %s962
          %968 = dma.vmem_to_hbm [thread:$0]  %s963, 256, %s961, %s949, 128, 128, 8
        $region64: #{tpu_custom_call.1} parent=47 // pred_fallthru
          _
      $region48: #{tpu_custom_call.1} parent=5 // pred_fallthru
        _
      %p969 = scmp.le.s32.totalorder 2, %s20
      // Predicated region
      $region65: #{tpu_custom_call.1} parent=5 // pred_check
        %p970 = pneg %p969
      $region66: #{tpu_custom_call.1} parent=5 // pred_check_branch
        %972 = sbr.rel (%p970) target = $region68
      $region67: #{tpu_custom_call.1} parent=5 // pred_region
        %s973 = ssub.s32 %s20, 2
        // Predicated region
        $region69: #{tpu_custom_call.1} parent=67 // pred_check
          %p974 = pneg %p201
        $region70: #{tpu_custom_call.1} parent=67 // pred_check_branch
          %976 = sbr.rel (%p974) target = $region72
        $region71: #{tpu_custom_call.1} parent=67 // pred_region
          %s977 = sand.u32 %s186, 1
          %s978 = scalar_lea.sflag [#allocation5], %s977
          %s979 = sand.u32 %s186, 1
          %s980 = smul.addr %s979, 16
          %s981 = scalar_lea.vmem [#allocation9], %s980
          %982 = dma.done %s978, 256
        $region72: #{tpu_custom_call.1} parent=67 // pred_fallthru
          _
      $region68: #{tpu_custom_call.1} parent=5 // pred_fallthru
        _
    $region6: #{tpu_custom_call.1} parent=1 // loop_footer
      %s24 = sadd.s32 1, %s20
    $region7: #{tpu_custom_call.1} parent=1 // loop_footer_branch
      %19 = sbr.rel target = $region3
    $region8: #{tpu_custom_call.1} parent=1 // loop_exit
      _
    %983 = vsyncpa [#allocation4], 1
    %s984 = scalar_lea.sflag [#allocation4], 1
    %985 = vsyncpa %s984, 1
    %986 = vsyncpa [#allocation7], 1
    %987 = vsyncpa [#allocation5], 1
    %s988 = scalar_lea.sflag [#allocation5], 1
    %989 = vsyncpa %s988, 1

</llo_original>
